<compile_context>
chip_gen: v6e
topology: v6e:2x2x1
jax: 0.10.0
libtpu: 0.0.40
codegen_flags: <defaults>
</compile_context>

<pallas_src>
import jax
import jax.numpy as jnp
from jax.experimental import pallas as pl
from jax.experimental.pallas import tpu as pltpu


def _make_attention_kernel(pack_shape=None):
    def attention_kernel(x_ref, w_ref, b_ref, o_ref):
        """One grid step == one tile of batch rows.

        x_ref: (BT, T, F) input tile (native dtype)
        w_ref: (1, F)     weight, f32, lane-dense row vector
        b_ref: (1, T)     bias,   f32, lane-dense row vector
        o_ref: (BT, F)    or packed (BT*F/128, 128) output tile
        """
        x = x_ref[...]                                  # native dtype, single live copy
        w = w_ref[...]                                  # (1, F) f32
        b = b_ref[...]                                  # (1, T) f32

        # ---- scores: VPU multiply + lane reduction over F (f32 accumulation) ----
        s = jnp.sum(x * w, axis=-1) + b                 # (BT, T) f32
        e = jnp.tanh(s)                                 # bounded in [-1, 1]

        # ---- softmax over T (lane axis); logits tanh-bounded -> no max subtraction ----
        p = jnp.exp(e)                                  # (BT, T)
        denom = jnp.sum(p, axis=-1, keepdims=True)      # (BT, 1)
        inv = pl.reciprocal(denom)                      # exact; approx=True broke the ref check
        a = p * inv                                     # (BT, T) f32

        # ---- weighted sum over T: pure VPU multiply + sublane reduce (no MXU) ----
        out = jnp.sum(x * a[:, :, None], axis=1)        # (BT, F) f32

        if pack_shape is not None:
            out = out.reshape(pack_shape)               # lane-dense 128-wide store slab
        o_ref[...] = out.astype(o_ref.dtype)

    return attention_kernel


def _pick_bt_tile(B, T, F, itemsize):
    """Batch rows per block, sized for v7x's 32 MiB scoped VMEM (safe on v5e/v6e too)."""
    if B <= 8:
        return B                                        # single full-array block
    f_lanes = pl.cdiv(F, 128) * 128                     # VMEM pads F up to the lane width
    # Per batch row: double-buffered input rows + ~2 row-sized f32 temporaries
    # (score product slab, weighted-sum product).
    per_row = 2 * T * f_lanes * itemsize + 2 * T * f_lanes * 4
    budget = 4 << 20                                    # ~4 MiB input tile budget (v7x-safe)
    tile = max(8, (budget // max(per_row, 1)) // 8 * 8)
    if B >= 16:
        # Keep >= 4 batch blocks so the "parallel" axis shards across both v7x TCs.
        tile = min(tile, max(8, (B // 4) // 8 * 8))
    return min(tile, B)


def attention_forward(x, W, b, *, bt_tile=None):
    """x: (B, T, F); W: (F, 1); b: (T, 1)  ->  (B, F). Matches the PyTorch module."""
    B, T, F = x.shape
    # Lane-dense, f32 parameter rows (score/softmax math stays f32 on all generations).
    w_row = W.reshape(1, F).astype(jnp.float32)
    b_row = b.reshape(1, T).astype(jnp.float32)

    if bt_tile is None:
        bt_tile = _pick_bt_tile(B, T, F, x.dtype.itemsize)
    bt_tile = min(bt_tile, B)
    grid = (pl.cdiv(B, bt_tile),)

    # ---- lane-dense output packing (unmasked vst) when shapes divide cleanly ----
    blk_elems = bt_tile * F
    pack_output = (
        F % 128 != 0
        and blk_elems % 128 == 0
        and B % bt_tile == 0
        and ((blk_elems // 128) % 8 == 0 or bt_tile == B)
    )
    if pack_output:
        pack_shape = (blk_elems // 128, 128)
        out_shape = jax.ShapeDtypeStruct((B * F // 128, 128), x.dtype)
        out_spec = pl.BlockSpec(pack_shape, lambda i: (i, 0))
    else:
        pack_shape = None
        out_shape = jax.ShapeDtypeStruct((B, F), x.dtype)
        out_spec = pl.BlockSpec((bt_tile, F), lambda i: (i, 0))

    # VMEM cap: double-buffered input tile + f32 temporaries + headroom, capped at 28 MiB.
    f_lanes = pl.cdiv(F, 128) * 128
    in_tile_bytes = bt_tile * T * f_lanes * x.dtype.itemsize
    f32_temp_bytes = 2 * bt_tile * T * f_lanes * 4
    vmem_limit = int(min(max(2 * in_tile_bytes + f32_temp_bytes + (4 << 20), 16 << 20),
                         28 << 20))

    kernel = _make_attention_kernel(pack_shape)

    result = pl.pallas_call(
        kernel,
        out_shape=out_shape,
        grid_spec=pltpu.PrefetchScalarGridSpec(
            num_scalar_prefetch=0,
            grid=grid,
            in_specs=[
                pl.BlockSpec((bt_tile, T, F), lambda i: (i, 0, 0)),
                pl.BlockSpec((1, F), lambda i: (0, 0)),   # resident (constant index_map)
                pl.BlockSpec((1, T), lambda i: (0, 0)),   # resident (constant index_map)
            ],
            out_specs=out_spec,
        ),
        compiler_params=pltpu.CompilerParams(
            dimension_semantics=("parallel",),            # batch blocks -> both v7x TCs
            vmem_limit_bytes=vmem_limit,
        ),
    )(x, w_row, b_row)

    if pack_output:
        result = result.reshape(B, F)                     # free layout plumbing in XLA
    return result


def attention_reference(x, W, b):
    """Plain-JAX reference mirroring the PyTorch forward exactly."""
    e = jnp.tanh(jnp.matmul(x, W) + b[None])              # (B, T, 1)
    a = jax.nn.softmax(e, axis=1)                         # softmax over time
    return jnp.sum(x * a, axis=1)                         # (B, F)


if __name__ == "__main__":
    # Small shapes consistent with the module: batch=2, time_steps=8, feature_dim=32
    B, T, F = 2, 8, 32

    key = jax.random.PRNGKey(0)
    kx, kw = jax.random.split(key)

    x = jax.random.normal(kx, (B, T, F), dtype=jnp.float32)

    # Deterministic parameter init mirroring reset_parameters():
    #   W ~ xavier_normal_  (std = sqrt(2 / (F + 1))), b = zeros
    xavier_std = (2.0 / (F + 1)) ** 0.5
    W = jax.random.normal(kw, (F, 1), dtype=jnp.float32) * xavier_std
    b = jnp.zeros((T, 1), dtype=jnp.float32)

    out = attention_forward(x, W, b)
    out = jax.block_until_ready(out)

    ref = attention_reference(x, W, b)
    assert out.shape == (B, F)
    # Exact-reciprocal softmax: expect ~1e-6 level agreement with the reference.
    assert jnp.allclose(out, ref, atol=1e-4, rtol=1e-4), "mismatch vs reference"

    print("KERNEL_OK")
</pallas_src>

<mosaic_0001>
module attributes {stable_mosaic.version = 11 : i64} {
  func.func @attention_kernel(%arg0: i32, %arg1: memref<2x8x32xf32, #tpu.memory_space<vmem>>, %arg2: memref<1x32xf32, #tpu.memory_space<vmem>>, %arg3: memref<1x8xf32, #tpu.memory_space<vmem>>, %arg4: memref<2x32xf32, #tpu.memory_space<vmem>>) attributes {dimension_semantics = [#tpu.dimension_semantics<parallel>], iteration_bounds = array<i64: 1>, scalar_prefetch = 0 : i64, scratch_operands = 0 : i64, tpu.core_type = #tpu.core_type<tc>, window_params = [{transform_indices = @transform_0, window_bounds = array<i64: 2, 8, 32>}, {pipeline_mode = #tpu.pipeline_mode<synchronous>, transform_indices = @transform_1, window_bounds = array<i64: 1, 32>}, {pipeline_mode = #tpu.pipeline_mode<synchronous>, transform_indices = @transform_2, window_bounds = array<i64: 1, 8>}, {transform_indices = @transform_3, window_bounds = array<i64: 2, 32>}]} {
    %c0 = arith.constant 0 : index
    %c0_0 = arith.constant 0 : index
    %c0_1 = arith.constant 0 : index
    %0 = vector.load %arg1[%c0, %c0_0, %c0_1] : memref<2x8x32xf32, #tpu.memory_space<vmem>>, vector<2x8x32xf32>
    %c0_2 = arith.constant 0 : index
    %c0_3 = arith.constant 0 : index
    %1 = vector.load %arg2[%c0_2, %c0_3] : memref<1x32xf32, #tpu.memory_space<vmem>>, vector<1x32xf32>
    %c0_4 = arith.constant 0 : index
    %c0_5 = arith.constant 0 : index
    %2 = vector.load %arg3[%c0_4, %c0_5] : memref<1x8xf32, #tpu.memory_space<vmem>>, vector<1x8xf32>
    %3 = vector.shape_cast %1 : vector<1x32xf32> to vector<1x1x32xf32>
    %4 = vector.broadcast %3 : vector<1x1x32xf32> to vector<2x8x32xf32>
    %5 = arith.mulf %0, %4 : vector<2x8x32xf32>
    %cst = arith.constant dense<0.000000e+00> : vector<2x8xf32>
    %6 = vector.multi_reduction <add>, %5, %cst [2] : vector<2x8x32xf32> to vector<2x8xf32>
    %7 = vector.broadcast %2 : vector<1x8xf32> to vector<2x8xf32>
    %8 = arith.addf %6, %7 : vector<2x8xf32>
    %9 = math.tanh %8 : vector<2x8xf32>
    %10 = math.exp %9 : vector<2x8xf32>
    %cst_6 = arith.constant dense<0.000000e+00> : vector<2xf32>
    %11 = vector.multi_reduction <add>, %10, %cst_6 [1] : vector<2x8xf32> to vector<2xf32>
    %12 = vector.shape_cast %11 : vector<2xf32> to vector<2x1xf32>
    %13 = tpu.reciprocal %12 : vector<2x1xf32> -> vector<2x1xf32>
    %14 = vector.broadcast %13 : vector<2x1xf32> to vector<2x8xf32>
    %15 = arith.mulf %10, %14 : vector<2x8xf32>
    %16 = vector.shape_cast %15 : vector<2x8xf32> to vector<2x8x1xf32>
    %17 = vector.broadcast %16 : vector<2x8x1xf32> to vector<2x8x32xf32>
    %18 = arith.mulf %0, %17 : vector<2x8x32xf32>
    %cst_7 = arith.constant dense<0.000000e+00> : vector<2x32xf32>
    %19 = vector.multi_reduction <add>, %18, %cst_7 [1] : vector<2x8x32xf32> to vector<2x32xf32>
    %c0_8 = arith.constant 0 : index
    %c0_9 = arith.constant 0 : index
    %20 = vector.load %arg4[%c0_8, %c0_9] : memref<2x32xf32, #tpu.memory_space<vmem>>, vector<2x32xf32>
    tpu.vector_store %arg4[%c0_8, %c0_9], %19 {strides = array<i32>} : memref<2x32xf32, #tpu.memory_space<vmem>>, vector<2x32xf32>,
    return
  }
  func.func @transform_0(%arg0: i32) -> (i32, i32, i32) {
    %c0_i32 = arith.constant 0 : i32
    %c0_i32_0 = arith.constant 0 : i32
    %c0_i32_1 = arith.constant 0 : i32
    return %arg0, %c0_i32, %c0_i32_0 : i32, i32, i32
  }
  func.func @transform_1(%arg0: i32) -> (i32, i32) {
    %c0_i32 = arith.constant 0 : i32
    %c0_i32_0 = arith.constant 0 : i32
    %c0_i32_1 = arith.constant 0 : i32
    return %c0_i32, %c0_i32_0 : i32, i32
  }
  func.func @transform_2(%arg0: i32) -> (i32, i32) {
    %c0_i32 = arith.constant 0 : i32
    %c0_i32_0 = arith.constant 0 : i32
    %c0_i32_1 = arith.constant 0 : i32
    return %c0_i32, %c0_i32_0 : i32, i32
  }
  func.func @transform_3(%arg0: i32) -> (i32, i32) {
    %c0_i32 = arith.constant 0 : i32
    %c0_i32_0 = arith.constant 0 : i32
    return %arg0, %c0_i32 : i32, i32
  }
}

</mosaic_0001>

<llo_original>
// kernel: tpu_custom_call.1
$region0: #{tpu_custom_call.1}
  #allocation0 [shape = 'u32[]', space=smem, size = 0x4, offset = 0x4, fixed_abs, tag = 'smem constant byte address 0x4 - core index']
  #allocation1 [shape = 'u32[144,128]{1,0:T(1,128)}', space=vmem, size = 0x12000, scoped, tag = 'internal scratch']
  %s0 = inlined_call_operand.hbm [shape: f32[2,8,32], index: 0, kind: input, shape index: {}]
  %s1 = inlined_call_operand.vmem [shape: f32[1,32], index: 1, kind: input, shape index: {}]
  %s2 = inlined_call_operand.vmem [shape: f32[1,8], index: 2, kind: input, shape index: {}]
  %s3 = inlined_call_operand.hbm [shape: f32[2,32], index: 3, kind: output, shape index: {}]
  %s4 = sld [smem:[#allocation0]]
  $region26: #{tpu_custom_call.1} parent=0
    _
  %s6 = ssub.s32 1, %s4
  %s7 = scalar_select 0, %s6, %s4
  $region1: #{tpu_custom_call.1} parent=0
    #allocation2 [shape = 'u8[8192]{0}', space=vmem, size = 0x2000, scoped, tag = 'input window, operand 0, single buffered']
    #allocation3 [shape = 's32[1]{0}', space=sflag, size = 0x4, scoped, tag = 'scoped memory for tpu_custom_call.1']
    #allocation4 [shape = 's32[1]{0}', space=sflag, size = 0x4, scoped, tag = 'scoped memory for tpu_custom_call.1']
    #allocation5 [shape = 'u8[1024]{0}', space=vmem, size = 0x400, scoped, tag = 'output window, operand 0, single buffered']
    %8 = vsyncpa [#allocation3], 0
    %9 = vsyncpa [#allocation4], 0
    // Predicated region
    $region2: #{tpu_custom_call.1} parent=1 // pred_check
      _
    $region3: #{tpu_custom_call.1} parent=1 // pred_check_branch
      %11 = sbr.rel (0) target = $region5
    $region4: #{tpu_custom_call.1} parent=1 // pred_region
      %s13 = ssub.s32 256, 256
      %14 = vsyncadd [#allocation3], %s13
      %s15 = sshll.u32 [#allocation2], 4
      %s16 = int_to_ptr.vmem [resolvable:$true] %s15
      %21 = dma.hbm_to_vmem [thread:$0]  %s0, 256, %s16, [#allocation3], 128, 128, 8
    $region5: #{tpu_custom_call.1} parent=1 // pred_fallthru
      _
    // Predicated region
    $region6: #{tpu_custom_call.1} parent=1 // pred_check
      _
    $region7: #{tpu_custom_call.1} parent=1 // pred_check_branch
      %23 = sbr.rel (0) target = $region9
    $region8: #{tpu_custom_call.1} parent=1 // pred_region
      _
    $region9: #{tpu_custom_call.1} parent=1 // pred_fallthru
      _
    // Predicated region
    $region10: #{tpu_custom_call.1} parent=1 // pred_check
      _
    $region11: #{tpu_custom_call.1} parent=1 // pred_check_branch
      %25 = sbr.rel (0) target = $region13
    $region12: #{tpu_custom_call.1} parent=1 // pred_region
      _
    $region13: #{tpu_custom_call.1} parent=1 // pred_fallthru
      _
    // Predicated region
    $region14: #{tpu_custom_call.1} parent=1 // pred_check
      _
    $region15: #{tpu_custom_call.1} parent=1 // pred_check_branch
      %27 = sbr.rel (0) target = $region17
    $region16: #{tpu_custom_call.1} parent=1 // pred_region
      %28 = dma.done [#allocation3], 256
    $region17: #{tpu_custom_call.1} parent=1 // pred_fallthru
      _
    %v29 = vld [vmem:[#allocation2] sm:$0xff]
    %v30 = vld [vmem:[#allocation2 + $0x8] sm:$0xff]
    %v31 = vld [vmem:[%s1] sm:$0x1]
    %v32 = vld [vmem:[%s2] sm:$0x1]
    %v34 = vlaneseq
    %v35 = vshrl.u32 %v34, 7
    %v36 = vsub.s32 0, %v35
    %v37 = vrot.slane %v31, %v36
    %v39 = vmul.f32 %v29, %v37
    %v40 = vmul.f32 %v30, %v37
    %vm41 = vcmask 261120
    %v42 = vsel %vm41, %v39, 0.0
    %43 = vadd.xlane.f32.xlu0 %v42
    %v44 = vpop.xlane.xlu0 %43
    %v45 = vsel %vm41, %v40, 0.0
    %46 = vadd.xlane.f32.xlu0 %v45
    %v47 = vpop.xlane.xlu0 %46
    %v49 = vlaneseq
    %v50 = vshrl.u32 %v49, 7
    %v51 = vsub.s32 0, %v50
    %v52 = vrot.slane %v32, %v51
    %54 = vbcast.lane.b32.xlu0 %v52, 256
    %v55 = vpop.permute.xlu0 %54
    %v57 = vadd.f32 %v44, %v55
    %v58 = vadd.f32 %v47, %v55
    %v59 = vtanh.pop %v57
    %v60 = vtanh.pop %v58
    %v61 = vmul.f32 %v59, 1.442695
    %v62 = vpow.pop %v61
    %v63 = vmul.f32 %v60, 1.442695
    %v64 = vpow.pop %v63
    %67 = vset.pattern.permute.xlu0 0
    %68 = vperm.xlu0 %67, %v62
    %v69 = vpop.permute.xlu0 %68
    %70 = vset.pattern.permute.xlu0 0
    %71 = vperm.xlu0 %70, %v64
    %v72 = vpop.permute.xlu0 %71
    %v73 = vlaneseq
    %v74 = vand.u32 %v73, 127
    %v75 = vlaneseq
    %v76 = vshrl.u32 %v75, 7
    %v77 = vsub.s32 %v74, %v76
    %v78 = vrot.slane %v69, %v77
    %v79 = vlaneseq
    %v80 = vshrl.u32 %v79, 7
    %v81 = vsub.s32 %v74, %v80
    %v82 = vrot.slane %v72, %v81
    %vm83 = vcmask 1041409
    %v84 = vsel %vm83, %v82, %v78
    %vm86 = vcmask 58368
    %v87 = vsel %vm86, %v84, 0.0
    %88 = vadd.xlane.f32.xlu0 %v87
    %v89 = vpop.xlane.xlu0 %88
    %v90 = vrcp.pop %v89
    %v92 = vlaneseq
    %v93 = vshrl.u32 %v92, 7
    %v94 = vsub.s32 0, %v93
    %v95 = vrot.slane %v90, %v94
    %v96 = vlaneseq
    %v97 = vshrl.u32 %v96, 7
    %v98 = vsub.s32 1, %v97
    %v99 = vrot.slane %v90, %v98
    %v102 = vmul.f32 %v62, %v95
    %v103 = vmul.f32 %v64, %v99
    %105 = vset.pattern.permute.xlu0 0
    %106 = vperm.xlu0 %105, %v102
    %v107 = vpop.permute.xlu0 %106
    %110 = vset.pattern.permute.xlu0 0
    %111 = vperm.xlu0 %110, %v103
    %v112 = vpop.permute.xlu0 %111
    %v114 = vmul.f32 %v29, %v107
    %v115 = vmul.f32 %v30, %v112
    %v116 = vsel %vm41, %v114, 0.0
    %v117 = vrot.slane %v116, 4
    %v118 = vadd.f32 %v116, %v117
    %v119 = vrot.slane %v118, 2
    %v120 = vadd.f32 %v118, %v119
    %v121 = vrot.slane %v120, 1
    %v122 = vadd.f32 %v120, %v121
    %v123 = vsel %vm41, %v115, 0.0
    %v124 = vrot.slane %v123, 4
    %v125 = vadd.f32 %v123, %v124
    %v126 = vrot.slane %v125, 2
    %v127 = vadd.f32 %v125, %v126
    %v128 = vrot.slane %v127, 1
    %v129 = vadd.f32 %v127, %v128
    %v132 = vsel %vm83, %v129, %v122
    %vm134 = vcmask 254976
    %135 = vst.msk [vmem:[#allocation5] sm:$0x3] %vm134, %v132
    // Predicated region
    $region18: #{tpu_custom_call.1} parent=1 // pred_check
      _
    $region19: #{tpu_custom_call.1} parent=1 // pred_check_branch
      %137 = sbr.rel (0) target = $region21
    $region20: #{tpu_custom_call.1} parent=1 // pred_region
      %s139 = ssub.s32 32, 32
      %140 = vsyncadd [#allocation4], %s139
      %s142 = sshll.u32 [#allocation5], 4
      %s143 = int_to_ptr.vmem [resolvable:$true] %s142
      %145 = dma.vmem_to_hbm [thread:$0]  %s143, 32, %s3, [#allocation4]
    $region21: #{tpu_custom_call.1} parent=1 // pred_fallthru
      _
    // Predicated region
    $region22: #{tpu_custom_call.1} parent=1 // pred_check
      _
    $region23: #{tpu_custom_call.1} parent=1 // pred_check_branch
      %147 = sbr.rel (0) target = $region25
    $region24: #{tpu_custom_call.1} parent=1 // pred_region
      %148 = dma.done [#allocation4], 32
    $region25: #{tpu_custom_call.1} parent=1 // pred_fallthru
      _
    %149 = vsyncpa [#allocation3], 1
    %150 = vsyncpa [#allocation4], 1

</llo_original>
